<compile_context>
chip_gen: v5e
topology: v5e:2x2
jax: 0.10.0
libtpu: 0.0.40
codegen_flags: <defaults>
</compile_context>

<pallas_src>
import functools

import jax
import jax.numpy as jnp
from jax.experimental import pallas as pl
from jax.experimental.pallas import tpu as pltpu

INPUT_DIM = 3
HIDDEN_DIM = 32
OUTPUT_DIM = 1
NUM_HIDDEN_LAYERS = 8          # first Linear + (NUM_HIDDEN_LAYERS - 1) hidden Linears
STRIP = 256                    # lane strip width per inner-loop step (dual-MXU friendly)


def _round_up(v, m):
    return ((v + m - 1) // m) * m


def mlp_kernel(x_ref, w0_ref, b0_ref, wh_ref, bh_ref, wo_ref, bo_ref, o_ref):
    """One batch-tile of the full MLP forward pass, batch on the lane axis.

    x_ref : (INPUT_DIM, TM)  f32   batch tile, lane-dense
    w0_ref: (HIDDEN_DIM, INPUT_DIM) f32      b0_ref: (HIDDEN_DIM, 1) f32
    wh_ref: (NUM_HIDDEN_LAYERS-1, HIDDEN_DIM, HIDDEN_DIM) bf16
    bh_ref: (NUM_HIDDEN_LAYERS-1, HIDDEN_DIM, 1)           f32
    wo_ref: (OUTPUT_DIM, HIDDEN_DIM) bf16    bo_ref: (OUTPUT_DIM, 1) f32
    o_ref : (OUTPUT_DIM, TM) f32   lane-dense output block
    """
    tm = x_ref.shape[1]
    n_strips = tm // STRIP

    # Hoist the (tiny, grid-constant) weights / biases out of the strip loop.
    w0 = w0_ref[...]          # (32, 3)      f32
    b0 = b0_ref[...]          # (32, 1)      f32
    wh = wh_ref[...]          # (7, 32, 32)  bf16
    bh = bh_ref[...]          # (7, 32, 1)   f32
    wo = wo_ref[...]          # (1, 32)      bf16
    bo = bo_ref[...]          # (1, 1)       f32

    def strip_body(s, carry):
        col = pl.multiple_of(s * STRIP, STRIP)
        x = x_ref[:, pl.ds(col, STRIP)]                       # (3, STRIP) f32

        # Input layer: contraction depth is only 3 -> broadcast VPU FMAs (f32)
        # instead of a nearly-empty MXU pass.  h: (32, STRIP)
        h = b0 + w0[:, 0:1] * x[0:1, :]
        for k in range(1, INPUT_DIM):
            h = h + w0[:, k:k + 1] * x[k:k + 1, :]
        h = jnp.maximum(h, 0.0)

        # Hidden layers: single-pass bf16 MXU dots, f32 accumulation,
        # f32 bias-add + ReLU.  Chain unrolled; (32, STRIP) stays in vregs.
        for l in range(NUM_HIDDEN_LAYERS - 1):
            z = jnp.dot(wh[l], h.astype(jnp.bfloat16),
                        preferred_element_type=jnp.float32)
            h = jnp.maximum(z + bh[l], 0.0)

        # Output layer + Sigmoid -> lane-dense (1, STRIP) store.
        z = jnp.dot(wo, h.astype(jnp.bfloat16),
                    preferred_element_type=jnp.float32) + bo
        o_ref[:, pl.ds(col, STRIP)] = jax.nn.sigmoid(z).astype(o_ref.dtype)
        return carry

    # fori_loop (not a static Python loop) so live ranges are bounded per strip.
    jax.lax.fori_loop(0, n_strips, strip_body, 0)


@functools.partial(jax.jit, static_argnames=("tm",))
def mlp_forward(x, params, *, tm=2048):
    """x: (N, INPUT_DIM) -> (N, OUTPUT_DIM).  tm is the max batch tile."""
    w0, b0, wh, bh, wo, bo = params
    n = x.shape[0]

    # Static tile-size selection (shapes are static under jit):
    #  * don't pad tiny batches up to the full default tile,
    #  * split into >=2 grid steps when the batch allows it (keeps both v7x
    #    TensorCores busy; harmless on single-TC v5e/v6e),
    #  * keep the tile a multiple of 512 (lane-aligned, >= STRIP).
    tm_eff = max(512, min(tm, _round_up(n, 512)))
    if n > 512:
        tm_eff = min(tm_eff, _round_up((n + 1) // 2, 512))
    n_pad = _round_up(n, tm_eff)

    # Layout plumbing: batch on the 128-lane axis; transpose-then-pad.
    xt = jnp.pad(x.T, ((0, 0), (0, n_pad - n)))               # (INPUT_DIM, n_pad)

    # Single-pass bf16 MXU operands for the hidden / output weights.
    wh_b = wh.astype(jnp.bfloat16)
    wo_b = wo.astype(jnp.bfloat16)

    grid = (n_pad // tm_eff,)
    in_specs = [
        pl.BlockSpec((INPUT_DIM, tm_eff), lambda i: (0, i)),              # x^T, batch-tiled
        pl.BlockSpec((HIDDEN_DIM, INPUT_DIM), lambda i: (0, 0)),          # w0
        pl.BlockSpec((HIDDEN_DIM, 1), lambda i: (0, 0)),                  # b0
        pl.BlockSpec((NUM_HIDDEN_LAYERS - 1, HIDDEN_DIM, HIDDEN_DIM),
                     lambda i: (0, 0, 0)),                                # wh (bf16)
        pl.BlockSpec((NUM_HIDDEN_LAYERS - 1, HIDDEN_DIM, 1),
                     lambda i: (0, 0, 0)),                                # bh
        pl.BlockSpec((OUTPUT_DIM, HIDDEN_DIM), lambda i: (0, 0)),         # wo (bf16)
        pl.BlockSpec((OUTPUT_DIM, 1), lambda i: (0, 0)),                  # bo
    ]
    out_specs = pl.BlockSpec((OUTPUT_DIM, tm_eff), lambda i: (0, i))

    out_t = pl.pallas_call(
        mlp_kernel,
        out_shape=jax.ShapeDtypeStruct((OUTPUT_DIM, n_pad), jnp.float32),
        grid_spec=pl.GridSpec(grid=grid, in_specs=in_specs, out_specs=out_specs),
        compiler_params=pltpu.CompilerParams(
            dimension_semantics=("parallel",),   # batch tiles shard across TCs (v7x)
        ),
    )(xt, w0, b0, wh_b, bh, wo_b, bo)

    # Lane-dense (1, n_pad) slab -> (N, 1) with a slice + reshape (no transpose).
    return out_t[0, :n].reshape(n, OUTPUT_DIM)


def init_params(key):
    """Deterministic init in PyTorch nn.Linear layout: W=(out, in), b=(out, 1)."""
    ks = jax.random.split(key, 3)

    def lin(k, fan_in, fan_out):
        bound = 1.0 / jnp.sqrt(float(fan_in))
        kw, kb = jax.random.split(k)
        w = jax.random.uniform(kw, (fan_out, fan_in), jnp.float32, -bound, bound)
        b = jax.random.uniform(kb, (fan_out, 1), jnp.float32, -bound, bound)
        return w, b

    w0, b0 = lin(ks[0], INPUT_DIM, HIDDEN_DIM)

    wh_list, bh_list = [], []
    hk = jax.random.split(ks[1], NUM_HIDDEN_LAYERS - 1)
    for l in range(NUM_HIDDEN_LAYERS - 1):
        w, b = lin(hk[l], HIDDEN_DIM, HIDDEN_DIM)
        wh_list.append(w)
        bh_list.append(b)
    wh = jnp.stack(wh_list, axis=0)                  # (7, 32, 32)
    bh = jnp.stack(bh_list, axis=0)                  # (7, 32, 1)

    wo, bo = lin(ks[2], HIDDEN_DIM, OUTPUT_DIM)      # (1, 32), (1, 1)
    return (w0, b0, wh, bh, wo, bo)


def reference_forward(x, params):
    """Plain-JAX f32 reference (PyTorch semantics: y = x @ W.T + b)."""
    w0, b0, wh, bh, wo, bo = params
    hp = jax.lax.Precision.HIGHEST
    h = jnp.maximum(jnp.dot(x, w0.T, precision=hp) + b0.T, 0.0)
    for l in range(NUM_HIDDEN_LAYERS - 1):
        h = jnp.maximum(jnp.dot(h, wh[l].T, precision=hp) + bh[l].T, 0.0)
    return jax.nn.sigmoid(jnp.dot(h, wo.T, precision=hp) + bo.T)


if __name__ == "__main__":
    key = jax.random.PRNGKey(0)
    k_param, k_x = jax.random.split(key)

    params = init_params(k_param)

    batch = 16
    x = jax.random.normal(k_x, (batch, INPUT_DIM), dtype=jnp.float32)

    # Small demo batch; wrapper pads up to one lane-dense 512-wide tile.
    out = jax.block_until_ready(mlp_forward(x, params))
    ref = reference_forward(x, params)

    assert out.shape == (batch, OUTPUT_DIM)
    # bf16 single-pass MXU dots in the kernel vs f32 HIGHEST reference
    # -> loosened tolerance (per review).
    assert jnp.allclose(out, ref, atol=1e-2, rtol=1e-2), \
        float(jnp.max(jnp.abs(out - ref)))

    print("KERNEL_OK")
</pallas_src>

<mosaic_0001>
module attributes {stable_mosaic.version = 11 : i64} {
  func.func @mlp_kernel(%arg0: i32, %arg1: memref<3x512xf32, #tpu.memory_space<vmem>>, %arg2: memref<32x3xf32, #tpu.memory_space<vmem>>, %arg3: memref<32x1xf32, #tpu.memory_space<vmem>>, %arg4: memref<7x32x32xbf16, #tpu.memory_space<vmem>>, %arg5: memref<7x32x1xf32, #tpu.memory_space<vmem>>, %arg6: memref<1x32xbf16, #tpu.memory_space<vmem>>, %arg7: memref<1x1xf32, #tpu.memory_space<vmem>>, %arg8: memref<1x512xf32, #tpu.memory_space<vmem>>) attributes {dimension_semantics = [#tpu.dimension_semantics<parallel>], iteration_bounds = array<i64: 1>, scalar_prefetch = 0 : i64, scratch_operands = 0 : i64, tpu.core_type = #tpu.core_type<tc>, window_params = [{transform_indices = @transform_0, window_bounds = array<i64: 3, 512>}, {pipeline_mode = #tpu.pipeline_mode<synchronous>, transform_indices = @transform_1, window_bounds = array<i64: 32, 3>}, {pipeline_mode = #tpu.pipeline_mode<synchronous>, transform_indices = @transform_2, window_bounds = array<i64: 32, 1>}, {pipeline_mode = #tpu.pipeline_mode<synchronous>, transform_indices = @transform_3, window_bounds = array<i64: 7, 32, 32>}, {pipeline_mode = #tpu.pipeline_mode<synchronous>, transform_indices = @transform_4, window_bounds = array<i64: 7, 32, 1>}, {pipeline_mode = #tpu.pipeline_mode<synchronous>, transform_indices = @transform_5, window_bounds = array<i64: 1, 32>}, {pipeline_mode = #tpu.pipeline_mode<synchronous>, transform_indices = @transform_6, window_bounds = array<i64: 1, 1>}, {transform_indices = @transform_7, window_bounds = array<i64: 1, 512>}]} {
    %c0 = arith.constant 0 : index
    %c0_0 = arith.constant 0 : index
    %0 = vector.load %arg2[%c0, %c0_0] : memref<32x3xf32, #tpu.memory_space<vmem>>, vector<32x3xf32>
    %c0_1 = arith.constant 0 : index
    %c0_2 = arith.constant 0 : index
    %1 = vector.load %arg3[%c0_1, %c0_2] : memref<32x1xf32, #tpu.memory_space<vmem>>, vector<32x1xf32>
    %c0_3 = arith.constant 0 : index
    %c0_4 = arith.constant 0 : index
    %c0_5 = arith.constant 0 : index
    %2 = vector.load %arg4[%c0_3, %c0_4, %c0_5] : memref<7x32x32xbf16, #tpu.memory_space<vmem>>, vector<7x32x32xbf16>
    %c0_6 = arith.constant 0 : index
    %c0_7 = arith.constant 0 : index
    %c0_8 = arith.constant 0 : index
    %3 = vector.load %arg5[%c0_6, %c0_7, %c0_8] : memref<7x32x1xf32, #tpu.memory_space<vmem>>, vector<7x32x1xf32>
    %c0_9 = arith.constant 0 : index
    %c0_10 = arith.constant 0 : index
    %4 = vector.load %arg6[%c0_9, %c0_10] : memref<1x32xbf16, #tpu.memory_space<vmem>>, vector<1x32xbf16>
    %c0_11 = arith.constant 0 : index
    %c0_12 = arith.constant 0 : index
    %5 = vector.load %arg7[%c0_11, %c0_12] : memref<1x1xf32, #tpu.memory_space<vmem>>, vector<1x1xf32>
    %c0_i32 = arith.constant 0 : i32
    %c2_i32 = arith.constant 2 : i32
    %6 = arith.addi %c0_i32, %c2_i32 : i32
    %c1_i32 = arith.constant 1 : i32
    scf.for %arg9 = %c0_i32 to %6 step %c1_i32  : i32 {
      %c256_i32 = arith.constant 256 : i32
      %7 = arith.muli %arg9, %c256_i32 : i32
      %8 = tpu.assume_multiple %7, 256 : i32
      %c0_14 = arith.constant 0 : index
      %9 = arith.index_cast %8 : i32 to index
      %10 = vector.load %arg1[%c0_14, %9] : memref<3x512xf32, #tpu.memory_space<vmem>>, vector<3x256xf32>
      %11 = vector.extract_strided_slice %0 {offsets = [0, 0], sizes = [32, 1], strides = [1, 1]} : vector<32x3xf32> to vector<32x1xf32>
      %12 = vector.extract_strided_slice %10 {offsets = [0, 0], sizes = [1, 256], strides = [1, 1]} : vector<3x256xf32> to vector<1x256xf32>
      %13 = vector.broadcast %11 : vector<32x1xf32> to vector<32x256xf32>
      %14 = vector.broadcast %12 : vector<1x256xf32> to vector<32x256xf32>
      %15 = arith.mulf %13, %14 : vector<32x256xf32>
      %16 = vector.broadcast %1 : vector<32x1xf32> to vector<32x256xf32>
      %17 = arith.addf %16, %15 : vector<32x256xf32>
      %18 = vector.extract_strided_slice %0 {offsets = [0, 1], sizes = [32, 1], strides = [1, 1]} : vector<32x3xf32> to vector<32x1xf32>
      %19 = vector.extract_strided_slice %10 {offsets = [1, 0], sizes = [1, 256], strides = [1, 1]} : vector<3x256xf32> to vector<1x256xf32>
      %20 = vector.broadcast %18 : vector<32x1xf32> to vector<32x256xf32>
      %21 = vector.broadcast %19 : vector<1x256xf32> to vector<32x256xf32>
      %22 = arith.mulf %20, %21 : vector<32x256xf32>
      %23 = arith.addf %17, %22 : vector<32x256xf32>
      %24 = vector.extract_strided_slice %0 {offsets = [0, 2], sizes = [32, 1], strides = [1, 1]} : vector<32x3xf32> to vector<32x1xf32>
      %25 = vector.extract_strided_slice %10 {offsets = [2, 0], sizes = [1, 256], strides = [1, 1]} : vector<3x256xf32> to vector<1x256xf32>
      %26 = vector.broadcast %24 : vector<32x1xf32> to vector<32x256xf32>
      %27 = vector.broadcast %25 : vector<1x256xf32> to vector<32x256xf32>
      %28 = arith.mulf %26, %27 : vector<32x256xf32>
      %29 = arith.addf %23, %28 : vector<32x256xf32>
      %cst = arith.constant 0.000000e+00 : f32
      %30 = vector.broadcast %cst : f32 to vector<32x256xf32>
      %31 = arith.maximumf %29, %30 : vector<32x256xf32>
      %32 = vector.extract_strided_slice %2 {offsets = [0, 0, 0], sizes = [1, 32, 32], strides = [1, 1, 1]} : vector<7x32x32xbf16> to vector<1x32x32xbf16>
      %33 = vector.shape_cast %32 : vector<1x32x32xbf16> to vector<32x32xbf16>
      %34 = arith.truncf %31 : vector<32x256xf32> to vector<32x256xbf16>
      %cst_15 = arith.constant dense<0.000000e+00> : vector<32x256xf32>
      %35 = tpu.matmul %33, %34, %cst_15 {dimension_numbers = #tpu.dot_dimension_numbers<[1], [0], [0], [1], [0, 0, 1, 1], [], []>} : vector<32x32xbf16>, vector<32x256xbf16>, vector<32x256xf32> -> vector<32x256xf32>
      %36 = vector.extract_strided_slice %3 {offsets = [0, 0, 0], sizes = [1, 32, 1], strides = [1, 1, 1]} : vector<7x32x1xf32> to vector<1x32x1xf32>
      %37 = vector.shape_cast %36 : vector<1x32x1xf32> to vector<32x1xf32>
      %38 = vector.broadcast %37 : vector<32x1xf32> to vector<32x256xf32>
      %39 = arith.addf %35, %38 : vector<32x256xf32>
      %cst_16 = arith.constant 0.000000e+00 : f32
      %40 = vector.broadcast %cst_16 : f32 to vector<32x256xf32>
      %41 = arith.maximumf %39, %40 : vector<32x256xf32>
      %42 = vector.extract_strided_slice %2 {offsets = [1, 0, 0], sizes = [1, 32, 32], strides = [1, 1, 1]} : vector<7x32x32xbf16> to vector<1x32x32xbf16>
      %43 = vector.shape_cast %42 : vector<1x32x32xbf16> to vector<32x32xbf16>
      %44 = arith.truncf %41 : vector<32x256xf32> to vector<32x256xbf16>
      %cst_17 = arith.constant dense<0.000000e+00> : vector<32x256xf32>
      %45 = tpu.matmul %43, %44, %cst_17 {dimension_numbers = #tpu.dot_dimension_numbers<[1], [0], [0], [1], [0, 0, 1, 1], [], []>} : vector<32x32xbf16>, vector<32x256xbf16>, vector<32x256xf32> -> vector<32x256xf32>
      %46 = vector.extract_strided_slice %3 {offsets = [1, 0, 0], sizes = [1, 32, 1], strides = [1, 1, 1]} : vector<7x32x1xf32> to vector<1x32x1xf32>
      %47 = vector.shape_cast %46 : vector<1x32x1xf32> to vector<32x1xf32>
      %48 = vector.broadcast %47 : vector<32x1xf32> to vector<32x256xf32>
      %49 = arith.addf %45, %48 : vector<32x256xf32>
      %cst_18 = arith.constant 0.000000e+00 : f32
      %50 = vector.broadcast %cst_18 : f32 to vector<32x256xf32>
      %51 = arith.maximumf %49, %50 : vector<32x256xf32>
      %52 = vector.extract_strided_slice %2 {offsets = [2, 0, 0], sizes = [1, 32, 32], strides = [1, 1, 1]} : vector<7x32x32xbf16> to vector<1x32x32xbf16>
      %53 = vector.shape_cast %52 : vector<1x32x32xbf16> to vector<32x32xbf16>
      %54 = arith.truncf %51 : vector<32x256xf32> to vector<32x256xbf16>
      %cst_19 = arith.constant dense<0.000000e+00> : vector<32x256xf32>
      %55 = tpu.matmul %53, %54, %cst_19 {dimension_numbers = #tpu.dot_dimension_numbers<[1], [0], [0], [1], [0, 0, 1, 1], [], []>} : vector<32x32xbf16>, vector<32x256xbf16>, vector<32x256xf32> -> vector<32x256xf32>
      %56 = vector.extract_strided_slice %3 {offsets = [2, 0, 0], sizes = [1, 32, 1], strides = [1, 1, 1]} : vector<7x32x1xf32> to vector<1x32x1xf32>
      %57 = vector.shape_cast %56 : vector<1x32x1xf32> to vector<32x1xf32>
      %58 = vector.broadcast %57 : vector<32x1xf32> to vector<32x256xf32>
      %59 = arith.addf %55, %58 : vector<32x256xf32>
      %cst_20 = arith.constant 0.000000e+00 : f32
      %60 = vector.broadcast %cst_20 : f32 to vector<32x256xf32>
      %61 = arith.maximumf %59, %60 : vector<32x256xf32>
      %62 = vector.extract_strided_slice %2 {offsets = [3, 0, 0], sizes = [1, 32, 32], strides = [1, 1, 1]} : vector<7x32x32xbf16> to vector<1x32x32xbf16>
      %63 = vector.shape_cast %62 : vector<1x32x32xbf16> to vector<32x32xbf16>
      %64 = arith.truncf %61 : vector<32x256xf32> to vector<32x256xbf16>
      %cst_21 = arith.constant dense<0.000000e+00> : vector<32x256xf32>
      %65 = tpu.matmul %63, %64, %cst_21 {dimension_numbers = #tpu.dot_dimension_numbers<[1], [0], [0], [1], [0, 0, 1, 1], [], []>} : vector<32x32xbf16>, vector<32x256xbf16>, vector<32x256xf32> -> vector<32x256xf32>
      %66 = vector.extract_strided_slice %3 {offsets = [3, 0, 0], sizes = [1, 32, 1], strides = [1, 1, 1]} : vector<7x32x1xf32> to vector<1x32x1xf32>
      %67 = vector.shape_cast %66 : vector<1x32x1xf32> to vector<32x1xf32>
      %68 = vector.broadcast %67 : vector<32x1xf32> to vector<32x256xf32>
      %69 = arith.addf %65, %68 : vector<32x256xf32>
      %cst_22 = arith.constant 0.000000e+00 : f32
      %70 = vector.broadcast %cst_22 : f32 to vector<32x256xf32>
      %71 = arith.maximumf %69, %70 : vector<32x256xf32>
      %72 = vector.extract_strided_slice %2 {offsets = [4, 0, 0], sizes = [1, 32, 32], strides = [1, 1, 1]} : vector<7x32x32xbf16> to vector<1x32x32xbf16>
      %73 = vector.shape_cast %72 : vector<1x32x32xbf16> to vector<32x32xbf16>
      %74 = arith.truncf %71 : vector<32x256xf32> to vector<32x256xbf16>
      %cst_23 = arith.constant dense<0.000000e+00> : vector<32x256xf32>
      %75 = tpu.matmul %73, %74, %cst_23 {dimension_numbers = #tpu.dot_dimension_numbers<[1], [0], [0], [1], [0, 0, 1, 1], [], []>} : vector<32x32xbf16>, vector<32x256xbf16>, vector<32x256xf32> -> vector<32x256xf32>
      %76 = vector.extract_strided_slice %3 {offsets = [4, 0, 0], sizes = [1, 32, 1], strides = [1, 1, 1]} : vector<7x32x1xf32> to vector<1x32x1xf32>
      %77 = vector.shape_cast %76 : vector<1x32x1xf32> to vector<32x1xf32>
      %78 = vector.broadcast %77 : vector<32x1xf32> to vector<32x256xf32>
      %79 = arith.addf %75, %78 : vector<32x256xf32>
      %cst_24 = arith.constant 0.000000e+00 : f32
      %80 = vector.broadcast %cst_24 : f32 to vector<32x256xf32>
      %81 = arith.maximumf %79, %80 : vector<32x256xf32>
      %82 = vector.extract_strided_slice %2 {offsets = [5, 0, 0], sizes = [1, 32, 32], strides = [1, 1, 1]} : vector<7x32x32xbf16> to vector<1x32x32xbf16>
      %83 = vector.shape_cast %82 : vector<1x32x32xbf16> to vector<32x32xbf16>
      %84 = arith.truncf %81 : vector<32x256xf32> to vector<32x256xbf16>
      %cst_25 = arith.constant dense<0.000000e+00> : vector<32x256xf32>
      %85 = tpu.matmul %83, %84, %cst_25 {dimension_numbers = #tpu.dot_dimension_numbers<[1], [0], [0], [1], [0, 0, 1, 1], [], []>} : vector<32x32xbf16>, vector<32x256xbf16>, vector<32x256xf32> -> vector<32x256xf32>
      %86 = vector.extract_strided_slice %3 {offsets = [5, 0, 0], sizes = [1, 32, 1], strides = [1, 1, 1]} : vector<7x32x1xf32> to vector<1x32x1xf32>
      %87 = vector.shape_cast %86 : vector<1x32x1xf32> to vector<32x1xf32>
      %88 = vector.broadcast %87 : vector<32x1xf32> to vector<32x256xf32>
      %89 = arith.addf %85, %88 : vector<32x256xf32>
      %cst_26 = arith.constant 0.000000e+00 : f32
      %90 = vector.broadcast %cst_26 : f32 to vector<32x256xf32>
      %91 = arith.maximumf %89, %90 : vector<32x256xf32>
      %92 = vector.extract_strided_slice %2 {offsets = [6, 0, 0], sizes = [1, 32, 32], strides = [1, 1, 1]} : vector<7x32x32xbf16> to vector<1x32x32xbf16>
      %93 = vector.shape_cast %92 : vector<1x32x32xbf16> to vector<32x32xbf16>
      %94 = arith.truncf %91 : vector<32x256xf32> to vector<32x256xbf16>
      %cst_27 = arith.constant dense<0.000000e+00> : vector<32x256xf32>
      %95 = tpu.matmul %93, %94, %cst_27 {dimension_numbers = #tpu.dot_dimension_numbers<[1], [0], [0], [1], [0, 0, 1, 1], [], []>} : vector<32x32xbf16>, vector<32x256xbf16>, vector<32x256xf32> -> vector<32x256xf32>
      %96 = vector.extract_strided_slice %3 {offsets = [6, 0, 0], sizes = [1, 32, 1], strides = [1, 1, 1]} : vector<7x32x1xf32> to vector<1x32x1xf32>
      %97 = vector.shape_cast %96 : vector<1x32x1xf32> to vector<32x1xf32>
      %98 = vector.broadcast %97 : vector<32x1xf32> to vector<32x256xf32>
      %99 = arith.addf %95, %98 : vector<32x256xf32>
      %cst_28 = arith.constant 0.000000e+00 : f32
      %100 = vector.broadcast %cst_28 : f32 to vector<32x256xf32>
      %101 = arith.maximumf %99, %100 : vector<32x256xf32>
      %102 = arith.truncf %101 : vector<32x256xf32> to vector<32x256xbf16>
      %cst_29 = arith.constant dense<0.000000e+00> : vector<1x256xf32>
      %103 = tpu.matmul %4, %102, %cst_29 {dimension_numbers = #tpu.dot_dimension_numbers<[1], [0], [0], [1], [0, 0, 1, 1], [], []>} : vector<1x32xbf16>, vector<32x256xbf16>, vector<1x256xf32> -> vector<1x256xf32>
      %104 = vector.broadcast %5 : vector<1x1xf32> to vector<1x256xf32>
      %105 = arith.addf %103, %104 : vector<1x256xf32>
      %106 = arith.negf %105 : vector<1x256xf32>
      %107 = math.exp %106 : vector<1x256xf32>
      %cst_30 = arith.constant 1.000000e+00 : f32
      %108 = vector.broadcast %cst_30 : f32 to vector<1x256xf32>
      %109 = arith.addf %108, %107 : vector<1x256xf32>
      %110 = arith.divf %108, %109 : vector<1x256xf32>
      %c0_31 = arith.constant 0 : index
      %111 = arith.index_cast %8 : i32 to index
      %112 = vector.load %arg8[%c0_31, %111] : memref<1x512xf32, #tpu.memory_space<vmem>>, vector<1x256xf32>
      tpu.vector_store %arg8[%c0_31, %111], %110 {strides = array<i32>} : memref<1x512xf32, #tpu.memory_space<vmem>>, vector<1x256xf32>,
    }
    %c2_i32_13 = arith.constant 2 : i32
    return
  }
  func.func @transform_0(%arg0: i32) -> (i32, i32) {
    %c0_i32 = arith.constant 0 : i32
    %c0_i32_0 = arith.constant 0 : i32
    return %c0_i32, %arg0 : i32, i32
  }
  func.func @transform_1(%arg0: i32) -> (i32, i32) {
    %c0_i32 = arith.constant 0 : i32
    %c0_i32_0 = arith.constant 0 : i32
    %c0_i32_1 = arith.constant 0 : i32
    return %c0_i32, %c0_i32_0 : i32, i32
  }
  func.func @transform_2(%arg0: i32) -> (i32, i32) {
    %c0_i32 = arith.constant 0 : i32
    %c0_i32_0 = arith.constant 0 : i32
    %c0_i32_1 = arith.constant 0 : i32
    return %c0_i32, %c0_i32_0 : i32, i32
  }
  func.func @transform_3(%arg0: i32) -> (i32, i32, i32) {
    %c0_i32 = arith.constant 0 : i32
    %c0_i32_0 = arith.constant 0 : i32
    %c0_i32_1 = arith.constant 0 : i32
    %c0_i32_2 = arith.constant 0 : i32
    return %c0_i32, %c0_i32_0, %c0_i32_1 : i32, i32, i32
  }
  func.func @transform_4(%arg0: i32) -> (i32, i32, i32) {
    %c0_i32 = arith.constant 0 : i32
    %c0_i32_0 = arith.constant 0 : i32
    %c0_i32_1 = arith.constant 0 : i32
    %c0_i32_2 = arith.constant 0 : i32
    return %c0_i32, %c0_i32_0, %c0_i32_1 : i32, i32, i32
  }
  func.func @transform_5(%arg0: i32) -> (i32, i32) {
    %c0_i32 = arith.constant 0 : i32
    %c0_i32_0 = arith.constant 0 : i32
    %c0_i32_1 = arith.constant 0 : i32
    return %c0_i32, %c0_i32_0 : i32, i32
  }
  func.func @transform_6(%arg0: i32) -> (i32, i32) {
    %c0_i32 = arith.constant 0 : i32
    %c0_i32_0 = arith.constant 0 : i32
    %c0_i32_1 = arith.constant 0 : i32
    return %c0_i32, %c0_i32_0 : i32, i32
  }
  func.func @transform_7(%arg0: i32) -> (i32, i32) {
    %c0_i32 = arith.constant 0 : i32
    %c0_i32_0 = arith.constant 0 : i32
    return %c0_i32, %arg0 : i32, i32
  }
}

</mosaic_0001>

<llo_original>
// kernel: mlp_forward.1
$region0: #{mlp_forward.1}
  #allocation0 [shape = 'u32[]', space=smem, size = 0x4, offset = 0x4, fixed_abs, tag = 'smem constant byte address 0x4 - core index']
  #allocation1 [shape = 'u32[72,128]{1,0:T(1,128)}', space=vmem, size = 0x9000, scoped, tag = 'internal scratch']
  #allocation2 [shape = 'f32[1,1]{1,0:T(1,128)S(1)}', space=vmem, size = 0x200, scoped, tag = 'scoped memory for mlp_forward.1']
  %s0 = inlined_call_operand.vmem [shape: f32[3,512], index: 0, kind: input, shape index: {}]
  %s1 = inlined_call_operand.vmem [shape: f32[32,3], index: 1, kind: input, shape index: {}]
  %s2 = inlined_call_operand.vmem [shape: f32[32,1], index: 2, kind: input, shape index: {}]
  %s3 = inlined_call_operand.vmem [shape: bf16[7,32,32], index: 3, kind: input, shape index: {}]
  %s4 = inlined_call_operand.vmem [shape: f32[7,32,1], index: 4, kind: input, shape index: {}]
  %s5 = inlined_call_operand.vmem [shape: bf16[1,32], index: 5, kind: input, shape index: {}]
  %s6 = inlined_call_operand.<no memory space> [shape: f32[1,1], index: 6, kind: input, shape index: {}]
  %s7 = inlined_call_operand.vmem [shape: f32[1,512], index: 7, kind: output, shape index: {}]
  %s8 = sld [smem:[#allocation0]]
  $region45: #{mlp_forward.1} parent=0
    _
  %s10 = ssub.s32 1, %s8
  %s11 = scalar_select 0, %s10, %s8
  %v12 = vstv %s6
  %13 = vst [vmem:[#allocation2] sm:$0x1] %v12
  // Predicated region
  $region2: #{mlp_forward.1} parent=0 // pred_check
    _
  $region3: #{mlp_forward.1} parent=0 // pred_check_branch
    %15 = sbr.rel (0) target = $region5
  $region4: #{mlp_forward.1} parent=0 // pred_region
    _
  $region5: #{mlp_forward.1} parent=0 // pred_fallthru
    _
  // Predicated region
  $region6: #{mlp_forward.1} parent=0 // pred_check
    _
  $region7: #{mlp_forward.1} parent=0 // pred_check_branch
    %17 = sbr.rel (0) target = $region9
  $region8: #{mlp_forward.1} parent=0 // pred_region
    _
  $region9: #{mlp_forward.1} parent=0 // pred_fallthru
    _
  // Predicated region
  $region10: #{mlp_forward.1} parent=0 // pred_check
    _
  $region11: #{mlp_forward.1} parent=0 // pred_check_branch
    %19 = sbr.rel (0) target = $region13
  $region12: #{mlp_forward.1} parent=0 // pred_region
    _
  $region13: #{mlp_forward.1} parent=0 // pred_fallthru
    _
  // Predicated region
  $region14: #{mlp_forward.1} parent=0 // pred_check
    _
  $region15: #{mlp_forward.1} parent=0 // pred_check_branch
    %21 = sbr.rel (0) target = $region17
  $region16: #{mlp_forward.1} parent=0 // pred_region
    _
  $region17: #{mlp_forward.1} parent=0 // pred_fallthru
    _
  // Predicated region
  $region18: #{mlp_forward.1} parent=0 // pred_check
    _
  $region19: #{mlp_forward.1} parent=0 // pred_check_branch
    %23 = sbr.rel (0) target = $region21
  $region20: #{mlp_forward.1} parent=0 // pred_region
    _
  $region21: #{mlp_forward.1} parent=0 // pred_fallthru
    _
  // Predicated region
  $region22: #{mlp_forward.1} parent=0 // pred_check
    _
  $region23: #{mlp_forward.1} parent=0 // pred_check_branch
    %25 = sbr.rel (0) target = $region25
  $region24: #{mlp_forward.1} parent=0 // pred_region
    _
  $region25: #{mlp_forward.1} parent=0 // pred_fallthru
    _
  // Predicated region
  $region26: #{mlp_forward.1} parent=0 // pred_check
    _
  $region27: #{mlp_forward.1} parent=0 // pred_check_branch
    %27 = sbr.rel (0) target = $region29
  $region28: #{mlp_forward.1} parent=0 // pred_region
    _
  $region29: #{mlp_forward.1} parent=0 // pred_fallthru
    _
  %v29 = vld [vmem:[%s1] sm:$0xff]
  %v30 = vld [vmem:[%s1 + $0x8] sm:$0xff]
  %v31 = vld [vmem:[%s1 + $0x10] sm:$0xff]
  %v32 = vld [vmem:[%s1 + $0x18] sm:$0xff]
  %v33 = vld [vmem:[%s2] sm:$0xff]
  %v34 = vld [vmem:[%s2 + $0x8] sm:$0xff]
  %v35 = vld [vmem:[%s2 + $0x10] sm:$0xff]
  %v36 = vld [vmem:[%s2 + $0x18] sm:$0xff]
  %v37 = vld [vmem:[%s3] sm:$0xf]
  %v38 = vld [vmem:[%s3 + $0x4] sm:$0xf]
  %v39 = vld [vmem:[%s3 + $0x8] sm:$0xf]
  %v40 = vld [vmem:[%s3 + $0xc] sm:$0xf]
  %v41 = vld [vmem:[%s3 + $0x10] sm:$0xf]
  %v42 = vld [vmem:[%s3 + $0x14] sm:$0xf]
  %v43 = vld [vmem:[%s3 + $0x18] sm:$0xf]
  %v44 = vld [vmem:[%s3 + $0x1c] sm:$0xf]
  %v45 = vld [vmem:[%s3 + $0x20] sm:$0xf]
  %v46 = vld [vmem:[%s3 + $0x24] sm:$0xf]
  %v47 = vld [vmem:[%s3 + $0x28] sm:$0xf]
  %v48 = vld [vmem:[%s3 + $0x2c] sm:$0xf]
  %v49 = vld [vmem:[%s3 + $0x30] sm:$0xf]
  %v50 = vld [vmem:[%s3 + $0x34] sm:$0xf]
  %v51 = vld [vmem:[%s3 + $0x38] sm:$0xf]
  %v52 = vld [vmem:[%s3 + $0x3c] sm:$0xf]
  %v53 = vld [vmem:[%s3 + $0x40] sm:$0xf]
  %v54 = vld [vmem:[%s3 + $0x44] sm:$0xf]
  %v55 = vld [vmem:[%s3 + $0x48] sm:$0xf]
  %v56 = vld [vmem:[%s3 + $0x4c] sm:$0xf]
  %v57 = vld [vmem:[%s3 + $0x50] sm:$0xf]
  %v58 = vld [vmem:[%s3 + $0x54] sm:$0xf]
  %v59 = vld [vmem:[%s3 + $0x58] sm:$0xf]
  %v60 = vld [vmem:[%s3 + $0x5c] sm:$0xf]
  %v61 = vld [vmem:[%s3 + $0x60] sm:$0xf]
  %v62 = vld [vmem:[%s3 + $0x64] sm:$0xf]
  %v63 = vld [vmem:[%s3 + $0x68] sm:$0xf]
  %v64 = vld [vmem:[%s3 + $0x6c] sm:$0xf]
  %v65 = vld [vmem:[%s4] sm:$0xff]
  %v66 = vld [vmem:[%s4 + $0x8] sm:$0xff]
  %v67 = vld [vmem:[%s4 + $0x10] sm:$0xff]
  %v68 = vld [vmem:[%s4 + $0x18] sm:$0xff]
  %v69 = vld [vmem:[%s4 + $0x20] sm:$0xff]
  %v70 = vld [vmem:[%s4 + $0x28] sm:$0xff]
  %v71 = vld [vmem:[%s4 + $0x30] sm:$0xff]
  %v72 = vld [vmem:[%s4 + $0x38] sm:$0xff]
  %v73 = vld [vmem:[%s4 + $0x40] sm:$0xff]
  %v74 = vld [vmem:[%s4 + $0x48] sm:$0xff]
  %v75 = vld [vmem:[%s4 + $0x50] sm:$0xff]
  %v76 = vld [vmem:[%s4 + $0x58] sm:$0xff]
  %v77 = vld [vmem:[%s4 + $0x60] sm:$0xff]
  %v78 = vld [vmem:[%s4 + $0x68] sm:$0xff]
  %v79 = vld [vmem:[%s4 + $0x70] sm:$0xff]
  %v80 = vld [vmem:[%s4 + $0x78] sm:$0xff]
  %v81 = vld [vmem:[%s4 + $0x80] sm:$0xff]
  %v82 = vld [vmem:[%s4 + $0x88] sm:$0xff]
  %v83 = vld [vmem:[%s4 + $0x90] sm:$0xff]
  %v84 = vld [vmem:[%s4 + $0x98] sm:$0xff]
  %v85 = vld [vmem:[%s4 + $0xa0] sm:$0xff]
  %v86 = vld [vmem:[%s4 + $0xa8] sm:$0xff]
  %v87 = vld [vmem:[%s4 + $0xb0] sm:$0xff]
  %v88 = vld [vmem:[%s4 + $0xb8] sm:$0xff]
  %v89 = vld [vmem:[%s4 + $0xc0] sm:$0xff]
  %v90 = vld [vmem:[%s4 + $0xc8] sm:$0xff]
  %v91 = vld [vmem:[%s4 + $0xd0] sm:$0xff]
  %v92 = vld [vmem:[%s4 + $0xd8] sm:$0xff]
  %v93 = vld [vmem:[%s5] sm:$0x1]
  %v94 = vld [vmem:[#allocation2] sm:$0x1]
  loop: start=0, step=1, limit=2
  $region30: #{mlp_forward.1} parent=0 // loop_pre_header
    _
  $region31: #{mlp_forward.1} parent=0 // loop_header
    %s96 = sphi 0, %s100
    %p97 = scmp.ge.s32.totalorder %s96, 2
  $region32: #{mlp_forward.1} parent=0 // loop_header_branch
    %99 = sbr.rel (%p97) target = $region36
  $region33: #{mlp_forward.1} parent=0 // loop_body
    %s101 = smul.u32 %s96, 256
    %s102 = sshra.s32 %s101, 7
    %s103 = sand.u32 %s101, 127
    %s104 = smul.addr %s102, 4
    %s105 = scalar_lea.vmem %s0, %s104
    %v106 = vld [vmem:[%s105] sm:$0x77]
    %108 = vset.pattern.permute.xlu0 0
    %109 = vperm.xlu0 %108, %v29
    %v110 = vpop.permute.xlu0 %109
    %113 = vset.pattern.permute.xlu0 0
    %114 = vperm.xlu0 %113, %v30
    %v115 = vpop.permute.xlu0 %114
    %118 = vset.pattern.permute.xlu0 0
    %119 = vperm.xlu0 %118, %v31
    %v120 = vpop.permute.xlu0 %119
    %123 = vset.pattern.permute.xlu0 0
    %124 = vperm.xlu0 %123, %v32
    %v125 = vpop.permute.xlu0 %124
    %v128 = vperm.slane %v106, 0
    %v129 = vperm.slane %v106, 4
    %v132 = vperm.slane %v128, 0
    %v133 = vperm.slane %v129, 0
    %v134 = vmul.f32 %v110, %v132
    %v135 = vmul.f32 %v110, %v133
    %v136 = vmul.f32 %v115, %v132
    %v137 = vmul.f32 %v115, %v133
    %v138 = vmul.f32 %v120, %v132
    %v139 = vmul.f32 %v120, %v133
    %v140 = vmul.f32 %v125, %v132
    %v141 = vmul.f32 %v125, %v133
    %143 = vset.pattern.permute.xlu0 0
    %144 = vperm.xlu0 %143, %v33
    %v145 = vpop.permute.xlu0 %144
    %148 = vset.pattern.permute.xlu0 0
    %149 = vperm.xlu0 %148, %v34
    %v150 = vpop.permute.xlu0 %149
    %153 = vset.pattern.permute.xlu0 0
    %154 = vperm.xlu0 %153, %v35
    %v155 = vpop.permute.xlu0 %154
    %158 = vset.pattern.permute.xlu0 0
    %159 = vperm.xlu0 %158, %v36
    %v160 = vpop.permute.xlu0 %159
    %v162 = vadd.f32 %v145, %v134
    %v163 = vadd.f32 %v145, %v135
    %v164 = vadd.f32 %v150, %v136
    %v165 = vadd.f32 %v150, %v137
    %v166 = vadd.f32 %v155, %v138
    %v167 = vadd.f32 %v155, %v139
    %v168 = vadd.f32 %v160, %v140
    %v169 = vadd.f32 %v160, %v141
    %170 = vset.pattern.permute.xlu0 1
    %171 = vperm.xlu0 %170, %v29
    %v172 = vpop.permute.xlu0 %171
    %174 = vset.pattern.permute.xlu0 1
    %175 = vperm.xlu0 %174, %v30
    %v176 = vpop.permute.xlu0 %175
    %178 = vset.pattern.permute.xlu0 1
    %179 = vperm.xlu0 %178, %v31
    %v180 = vpop.permute.xlu0 %179
    %182 = vset.pattern.permute.xlu0 1
    %183 = vperm.xlu0 %182, %v32
    %v184 = vpop.permute.xlu0 %183
    %v186 = vperm.slane %v106, 1
    %v187 = vperm.slane %v106, 5
    %v190 = vperm.slane %v186, 1
    %v191 = vperm.slane %v187, 1
    %v192 = vmul.f32 %v172, %v190
    %v193 = vmul.f32 %v172, %v191
    %v194 = vmul.f32 %v176, %v190
    %v195 = vmul.f32 %v176, %v191
    %v196 = vmul.f32 %v180, %v190
    %v197 = vmul.f32 %v180, %v191
    %v198 = vmul.f32 %v184, %v190
    %v199 = vmul.f32 %v184, %v191
    %v200 = vadd.f32 %v162, %v192
    %v201 = vadd.f32 %v163, %v193
    %v202 = vadd.f32 %v164, %v194
    %v203 = vadd.f32 %v165, %v195
    %v204 = vadd.f32 %v166, %v196
    %v205 = vadd.f32 %v167, %v197
    %v206 = vadd.f32 %v168, %v198
    %v207 = vadd.f32 %v169, %v199
    %208 = vset.pattern.permute.xlu0 2
    %209 = vperm.xlu0 %208, %v29
    %v210 = vpop.permute.xlu0 %209
    %212 = vset.pattern.permute.xlu0 2
    %213 = vperm.xlu0 %212, %v30
    %v214 = vpop.permute.xlu0 %213
    %216 = vset.pattern.permute.xlu0 2
    %217 = vperm.xlu0 %216, %v31
    %v218 = vpop.permute.xlu0 %217
    %220 = vset.pattern.permute.xlu0 2
    %221 = vperm.xlu0 %220, %v32
    %v222 = vpop.permute.xlu0 %221
    %v224 = vperm.slane %v106, 2
    %v225 = vperm.slane %v106, 6
    %v228 = vperm.slane %v224, 2
    %v229 = vperm.slane %v225, 2
    %v230 = vmul.f32 %v210, %v228
    %v231 = vmul.f32 %v210, %v229
    %v232 = vmul.f32 %v214, %v228
    %v233 = vmul.f32 %v214, %v229
    %v234 = vmul.f32 %v218, %v228
    %v235 = vmul.f32 %v218, %v229
    %v236 = vmul.f32 %v222, %v228
    %v237 = vmul.f32 %v222, %v229
    %v238 = vadd.f32 %v200, %v230
    %v239 = vadd.f32 %v201, %v231
    %v240 = vadd.f32 %v202, %v232
    %v241 = vadd.f32 %v203, %v233
    %v242 = vadd.f32 %v204, %v234
    %v243 = vadd.f32 %v205, %v235
    %v244 = vadd.f32 %v206, %v236
    %v245 = vadd.f32 %v207, %v237
    %v246 = vmax.f32 %v238, 0.0
    %v247 = vmax.f32 %v239, 0.0
    %v248 = vmax.f32 %v240, 0.0
    %v249 = vmax.f32 %v241, 0.0
    %v250 = vmax.f32 %v242, 0.0
    %v251 = vmax.f32 %v243, 0.0
    %v252 = vmax.f32 %v244, 0.0
    %v253 = vmax.f32 %v245, 0.0
    %v254 = vpack.c.bf16 %v248, %v246
    %v255 = vpack.c.bf16 %v249, %v247
    %v256 = vpack.c.bf16 %v252, %v250
    %v257 = vpack.c.bf16 %v253, %v251
    %259 = vset.pattern.permute.xlu0 0
    %260 = vperm.xlu0 %259, %v65
    %v261 = vpop.permute.xlu0 %260
    %264 = vset.pattern.permute.xlu0 0
    %265 = vperm.xlu0 %264, %v66
    %v266 = vpop.permute.xlu0 %265
    %269 = vset.pattern.permute.xlu0 0
    %270 = vperm.xlu0 %269, %v67
    %v271 = vpop.permute.xlu0 %270
    %274 = vset.pattern.permute.xlu0 0
    %275 = vperm.xlu0 %274, %v68
    %v276 = vpop.permute.xlu0 %275
    %v282 = vunpack.c.l.b16 %v37
    %v283 = vunpack.c.l.b16 %v38
    %v284 = vunpack.c.l.b16 %v39
    %v285 = vunpack.c.l.b16 %v40
    %v286 = vpack.c.b16 %v283, %v282
    %v287 = vpack.c.b16 %v285, %v284
    %vm288 = vcmask 261120
    %v290 = vsel %vm288, %v286, 0
    %v293 = vsel %vm288, %v287, 0
    %295 = vmatpush.bf16.msra.mxu0 0
    %296 = vmatpush.bf16.msra.mxu0 0
    %297 = vmatpush.bf16.msra.mxu0 0
    %298 = vmatpush.bf16.msra.mxu0 0
    %299 = vmatpush.bf16.msra.mxu0 0
    %300 = vmatpush.bf16.msra.mxu0 0
    %301 = vmatpush.bf16.msra.mxu0 %v256
    %302 = vmatpush.bf16.msra.mxu0 %v254
    %303 = vmatmul.bf16.gmra.mxu0 %v290
    %v304 = vpop.f32.mrf.mxu0
    %v305 = vadd.f32 %v261, %v304
    %v306 = vpop.f32.mrf.mxu0
    %v307 = vadd.f32 %v266, %v306
    %308 = vmatmul.bf16.gmra.mxu0 %v293
    %v309 = vpop.f32.mrf.mxu0
    %v310 = vadd.f32 %v271, %v309
    %v311 = vpop.f32.mrf.mxu0
    %v312 = vadd.f32 %v276, %v311
    %313 = vdwg.mxu0
    %314 = vmatpush.bf16.msra.mxu0 0
    %315 = vmatpush.bf16.msra.mxu0 0
    %316 = vmatpush.bf16.msra.mxu0 0
    %317 = vmatpush.bf16.msra.mxu0 0
    %318 = vmatpush.bf16.msra.mxu0 0
    %319 = vmatpush.bf16.msra.mxu0 0
    %320 = vmatpush.bf16.msra.mxu0 %v257
    %321 = vmatpush.bf16.msra.mxu0 %v255
    %322 = vmatmul.bf16.gmra.mxu0 %v290
    %v323 = vpop.f32.mrf.mxu0
    %v324 = vadd.f32 %v261, %v323
    %v325 = vpop.f32.mrf.mxu0
    %v326 = vadd.f32 %v266, %v325
    %327 = vmatmul.bf16.gmra.mxu0 %v293
    %v328 = vpop.f32.mrf.mxu0
    %v329 = vadd.f32 %v271, %v328
    %v330 = vpop.f32.mrf.mxu0
    %v331 = vadd.f32 %v276, %v330
    %332 = vdwg.mxu0
    %v333 = vmax.f32 %v305, 0.0
    %v334 = vmax.f32 %v324, 0.0
    %v335 = vmax.f32 %v307, 0.0
    %v336 = vmax.f32 %v326, 0.0
    %v337 = vmax.f32 %v310, 0.0
    %v338 = vmax.f32 %v329, 0.0
    %v339 = vmax.f32 %v312, 0.0
    %v340 = vmax.f32 %v331, 0.0
    %v341 = vpack.c.bf16 %v335, %v333
    %v342 = vpack.c.bf16 %v336, %v334
    %v343 = vpack.c.bf16 %v339, %v337
    %v344 = vpack.c.bf16 %v340, %v338
    %346 = vset.pattern.permute.xlu0 0
    %347 = vperm.xlu0 %346, %v69
    %v348 = vpop.permute.xlu0 %347
    %351 = vset.pattern.permute.xlu0 0
    %352 = vperm.xlu0 %351, %v70
    %v353 = vpop.permute.xlu0 %352
    %356 = vset.pattern.permute.xlu0 0
    %357 = vperm.xlu0 %356, %v71
    %v358 = vpop.permute.xlu0 %357
    %361 = vset.pattern.permute.xlu0 0
    %362 = vperm.xlu0 %361, %v72
    %v363 = vpop.permute.xlu0 %362
    %v369 = vunpack.c.l.b16 %v41
    %v370 = vunpack.c.l.b16 %v42
    %v371 = vunpack.c.l.b16 %v43
    %v372 = vunpack.c.l.b16 %v44
    %v373 = vpack.c.b16 %v370, %v369
    %v374 = vpack.c.b16 %v372, %v371
    %v376 = vsel %vm288, %v373, 0
    %v379 = vsel %vm288, %v374, 0
    %381 = vmatpush.bf16.msra.mxu0 0
    %382 = vmatpush.bf16.msra.mxu0 0
    %383 = vmatpush.bf16.msra.mxu0 0
    %384 = vmatpush.bf16.msra.mxu0 0
    %385 = vmatpush.bf16.msra.mxu0 0
    %386 = vmatpush.bf16.msra.mxu0 0
    %387 = vmatpush.bf16.msra.mxu0 %v343
    %388 = vmatpush.bf16.msra.mxu0 %v341
    %389 = vmatmul.bf16.gmra.mxu0 %v376
    %v390 = vpop.f32.mrf.mxu0
    %v391 = vadd.f32 %v348, %v390
    %v392 = vpop.f32.mrf.mxu0
    %v393 = vadd.f32 %v353, %v392
    %394 = vmatmul.bf16.gmra.mxu0 %v379
    %v395 = vpop.f32.mrf.mxu0
    %v396 = vadd.f32 %v358, %v395
    %v397 = vpop.f32.mrf.mxu0
    %v398 = vadd.f32 %v363, %v397
    %399 = vdwg.mxu0
    %400 = vmatpush.bf16.msra.mxu0 0
    %401 = vmatpush.bf16.msra.mxu0 0
    %402 = vmatpush.bf16.msra.mxu0 0
    %403 = vmatpush.bf16.msra.mxu0 0
    %404 = vmatpush.bf16.msra.mxu0 0
    %405 = vmatpush.bf16.msra.mxu0 0
    %406 = vmatpush.bf16.msra.mxu0 %v344
    %407 = vmatpush.bf16.msra.mxu0 %v342
    %408 = vmatmul.bf16.gmra.mxu0 %v376
    %v409 = vpop.f32.mrf.mxu0
    %v410 = vadd.f32 %v348, %v409
    %v411 = vpop.f32.mrf.mxu0
    %v412 = vadd.f32 %v353, %v411
    %413 = vmatmul.bf16.gmra.mxu0 %v379
    %v414 = vpop.f32.mrf.mxu0
    %v415 = vadd.f32 %v358, %v414
    %v416 = vpop.f32.mrf.mxu0
    %v417 = vadd.f32 %v363, %v416
    %418 = vdwg.mxu0
    %v419 = vmax.f32 %v391, 0.0
    %v420 = vmax.f32 %v410, 0.0
    %v421 = vmax.f32 %v393, 0.0
    %v422 = vmax.f32 %v412, 0.0
    %v423 = vmax.f32 %v396, 0.0
    %v424 = vmax.f32 %v415, 0.0
    %v425 = vmax.f32 %v398, 0.0
    %v426 = vmax.f32 %v417, 0.0
    %v427 = vpack.c.bf16 %v421, %v419
    %v428 = vpack.c.bf16 %v422, %v420
    %v429 = vpack.c.bf16 %v425, %v423
    %v430 = vpack.c.bf16 %v426, %v424
    %432 = vset.pattern.permute.xlu0 0
    %433 = vperm.xlu0 %432, %v73
    %v434 = vpop.permute.xlu0 %433
    %437 = vset.pattern.permute.xlu0 0
    %438 = vperm.xlu0 %437, %v74
    %v439 = vpop.permute.xlu0 %438
    %442 = vset.pattern.permute.xlu0 0
    %443 = vperm.xlu0 %442, %v75
    %v444 = vpop.permute.xlu0 %443
    %447 = vset.pattern.permute.xlu0 0
    %448 = vperm.xlu0 %447, %v76
    %v449 = vpop.permute.xlu0 %448
    %v455 = vunpack.c.l.b16 %v45
    %v456 = vunpack.c.l.b16 %v46
    %v457 = vunpack.c.l.b16 %v47
    %v458 = vunpack.c.l.b16 %v48
    %v459 = vpack.c.b16 %v456, %v455
    %v460 = vpack.c.b16 %v458, %v457
    %v462 = vsel %vm288, %v459, 0
    %v465 = vsel %vm288, %v460, 0
    %467 = vmatpush.bf16.msra.mxu0 0
    %468 = vmatpush.bf16.msra.mxu0 0
    %469 = vmatpush.bf16.msra.mxu0 0
    %470 = vmatpush.bf16.msra.mxu0 0
    %471 = vmatpush.bf16.msra.mxu0 0
    %472 = vmatpush.bf16.msra.mxu0 0
    %473 = vmatpush.bf16.msra.mxu0 %v429
    %474 = vmatpush.bf16.msra.mxu0 %v427
    %475 = vmatmul.bf16.gmra.mxu0 %v462
    %v476 = vpop.f32.mrf.mxu0
    %v477 = vadd.f32 %v434, %v476
    %v478 = vpop.f32.mrf.mxu0
    %v479 = vadd.f32 %v439, %v478
    %480 = vmatmul.bf16.gmra.mxu0 %v465
    %v481 = vpop.f32.mrf.mxu0
    %v482 = vadd.f32 %v444, %v481
    %v483 = vpop.f32.mrf.mxu0
    %v484 = vadd.f32 %v449, %v483
    %485 = vdwg.mxu0
    %486 = vmatpush.bf16.msra.mxu0 0
    %487 = vmatpush.bf16.msra.mxu0 0
    %488 = vmatpush.bf16.msra.mxu0 0
    %489 = vmatpush.bf16.msra.mxu0 0
    %490 = vmatpush.bf16.msra.mxu0 0
    %491 = vmatpush.bf16.msra.mxu0 0
    %492 = vmatpush.bf16.msra.mxu0 %v430
    %493 = vmatpush.bf16.msra.mxu0 %v428
    %494 = vmatmul.bf16.gmra.mxu0 %v462
    %v495 = vpop.f32.mrf.mxu0
    %v496 = vadd.f32 %v434, %v495
    %v497 = vpop.f32.mrf.mxu0
    %v498 = vadd.f32 %v439, %v497
    %499 = vmatmul.bf16.gmra.mxu0 %v465
    %v500 = vpop.f32.mrf.mxu0
    %v501 = vadd.f32 %v444, %v500
    %v502 = vpop.f32.mrf.mxu0
    %v503 = vadd.f32 %v449, %v502
    %504 = vdwg.mxu0
    %v505 = vmax.f32 %v477, 0.0
    %v506 = vmax.f32 %v496, 0.0
    %v507 = vmax.f32 %v479, 0.0
    %v508 = vmax.f32 %v498, 0.0
    %v509 = vmax.f32 %v482, 0.0
    %v510 = vmax.f32 %v501, 0.0
    %v511 = vmax.f32 %v484, 0.0
    %v512 = vmax.f32 %v503, 0.0
    %v513 = vpack.c.bf16 %v507, %v505
    %v514 = vpack.c.bf16 %v508, %v506
    %v515 = vpack.c.bf16 %v511, %v509
    %v516 = vpack.c.bf16 %v512, %v510
    %518 = vset.pattern.permute.xlu0 0
    %519 = vperm.xlu0 %518, %v77
    %v520 = vpop.permute.xlu0 %519
    %523 = vset.pattern.permute.xlu0 0
    %524 = vperm.xlu0 %523, %v78
    %v525 = vpop.permute.xlu0 %524
    %528 = vset.pattern.permute.xlu0 0
    %529 = vperm.xlu0 %528, %v79
    %v530 = vpop.permute.xlu0 %529
    %533 = vset.pattern.permute.xlu0 0
    %534 = vperm.xlu0 %533, %v80
    %v535 = vpop.permute.xlu0 %534
    %v541 = vunpack.c.l.b16 %v49
    %v542 = vunpack.c.l.b16 %v50
    %v543 = vunpack.c.l.b16 %v51
    %v544 = vunpack.c.l.b16 %v52
    %v545 = vpack.c.b16 %v542, %v541
    %v546 = vpack.c.b16 %v544, %v543
    %v548 = vsel %vm288, %v545, 0
    %v551 = vsel %vm288, %v546, 0
    %553 = vmatpush.bf16.msra.mxu0 0
    %554 = vmatpush.bf16.msra.mxu0 0
    %555 = vmatpush.bf16.msra.mxu0 0
    %556 = vmatpush.bf16.msra.mxu0 0
    %557 = vmatpush.bf16.msra.mxu0 0
    %558 = vmatpush.bf16.msra.mxu0 0
    %559 = vmatpush.bf16.msra.mxu0 %v515
    %560 = vmatpush.bf16.msra.mxu0 %v513
    %561 = vmatmul.bf16.gmra.mxu0 %v548
    %v562 = vpop.f32.mrf.mxu0
    %v563 = vadd.f32 %v520, %v562
    %v564 = vpop.f32.mrf.mxu0
    %v565 = vadd.f32 %v525, %v564
    %566 = vmatmul.bf16.gmra.mxu0 %v551
    %v567 = vpop.f32.mrf.mxu0
    %v568 = vadd.f32 %v530, %v567
    %v569 = vpop.f32.mrf.mxu0
    %v570 = vadd.f32 %v535, %v569
    %571 = vdwg.mxu0
    %572 = vmatpush.bf16.msra.mxu0 0
    %573 = vmatpush.bf16.msra.mxu0 0
    %574 = vmatpush.bf16.msra.mxu0 0
    %575 = vmatpush.bf16.msra.mxu0 0
    %576 = vmatpush.bf16.msra.mxu0 0
    %577 = vmatpush.bf16.msra.mxu0 0
    %578 = vmatpush.bf16.msra.mxu0 %v516
    %579 = vmatpush.bf16.msra.mxu0 %v514
    %580 = vmatmul.bf16.gmra.mxu0 %v548
    %v581 = vpop.f32.mrf.mxu0
    %v582 = vadd.f32 %v520, %v581
    %v583 = vpop.f32.mrf.mxu0
    %v584 = vadd.f32 %v525, %v583
    %585 = vmatmul.bf16.gmra.mxu0 %v551
    %v586 = vpop.f32.mrf.mxu0
    %v587 = vadd.f32 %v530, %v586
    %v588 = vpop.f32.mrf.mxu0
    %v589 = vadd.f32 %v535, %v588
    %590 = vdwg.mxu0
    %v591 = vmax.f32 %v563, 0.0
    %v592 = vmax.f32 %v582, 0.0
    %v593 = vmax.f32 %v565, 0.0
    %v594 = vmax.f32 %v584, 0.0
    %v595 = vmax.f32 %v568, 0.0
    %v596 = vmax.f32 %v587, 0.0
    %v597 = vmax.f32 %v570, 0.0
    %v598 = vmax.f32 %v589, 0.0
    %v599 = vpack.c.bf16 %v593, %v591
    %v600 = vpack.c.bf16 %v594, %v592
    %v601 = vpack.c.bf16 %v597, %v595
    %v602 = vpack.c.bf16 %v598, %v596
    %604 = vset.pattern.permute.xlu0 0
    %605 = vperm.xlu0 %604, %v81
    %v606 = vpop.permute.xlu0 %605
    %609 = vset.pattern.permute.xlu0 0
    %610 = vperm.xlu0 %609, %v82
    %v611 = vpop.permute.xlu0 %610
    %614 = vset.pattern.permute.xlu0 0
    %615 = vperm.xlu0 %614, %v83
    %v616 = vpop.permute.xlu0 %615
    %619 = vset.pattern.permute.xlu0 0
    %620 = vperm.xlu0 %619, %v84
    %v621 = vpop.permute.xlu0 %620
    %v627 = vunpack.c.l.b16 %v53
    %v628 = vunpack.c.l.b16 %v54
    %v629 = vunpack.c.l.b16 %v55
    %v630 = vunpack.c.l.b16 %v56
    %v631 = vpack.c.b16 %v628, %v627
    %v632 = vpack.c.b16 %v630, %v629
    %v634 = vsel %vm288, %v631, 0
    %v637 = vsel %vm288, %v632, 0
    %639 = vmatpush.bf16.msra.mxu0 0
    %640 = vmatpush.bf16.msra.mxu0 0
    %641 = vmatpush.bf16.msra.mxu0 0
    %642 = vmatpush.bf16.msra.mxu0 0
    %643 = vmatpush.bf16.msra.mxu0 0
    %644 = vmatpush.bf16.msra.mxu0 0
    %645 = vmatpush.bf16.msra.mxu0 %v601
    %646 = vmatpush.bf16.msra.mxu0 %v599
    %647 = vmatmul.bf16.gmra.mxu0 %v634
    %v648 = vpop.f32.mrf.mxu0
    %v649 = vadd.f32 %v606, %v648
    %v650 = vpop.f32.mrf.mxu0
    %v651 = vadd.f32 %v611, %v650
    %652 = vmatmul.bf16.gmra.mxu0 %v637
    %v653 = vpop.f32.mrf.mxu0
    %v654 = vadd.f32 %v616, %v653
    %v655 = vpop.f32.mrf.mxu0
    %v656 = vadd.f32 %v621, %v655
    %657 = vdwg.mxu0
    %658 = vmatpush.bf16.msra.mxu0 0
    %659 = vmatpush.bf16.msra.mxu0 0
    %660 = vmatpush.bf16.msra.mxu0 0
    %661 = vmatpush.bf16.msra.mxu0 0
    %662 = vmatpush.bf16.msra.mxu0 0
    %663 = vmatpush.bf16.msra.mxu0 0
    %664 = vmatpush.bf16.msra.mxu0 %v602
    %665 = vmatpush.bf16.msra.mxu0 %v600
    %666 = vmatmul.bf16.gmra.mxu0 %v634
    %v667 = vpop.f32.mrf.mxu0
    %v668 = vadd.f32 %v606, %v667
    %v669 = vpop.f32.mrf.mxu0
    %v670 = vadd.f32 %v611, %v669
    %671 = vmatmul.bf16.gmra.mxu0 %v637
    %v672 = vpop.f32.mrf.mxu0
    %v673 = vadd.f32 %v616, %v672
    %v674 = vpop.f32.mrf.mxu0
    %v675 = vadd.f32 %v621, %v674
    %676 = vdwg.mxu0
    %v677 = vmax.f32 %v649, 0.0
    %v678 = vmax.f32 %v668, 0.0
    %v679 = vmax.f32 %v651, 0.0
    %v680 = vmax.f32 %v670, 0.0
    %v681 = vmax.f32 %v654, 0.0
    %v682 = vmax.f32 %v673, 0.0
    %v683 = vmax.f32 %v656, 0.0
    %v684 = vmax.f32 %v675, 0.0
    %v685 = vpack.c.bf16 %v679, %v677
    %v686 = vpack.c.bf16 %v680, %v678
    %v687 = vpack.c.bf16 %v683, %v681
    %v688 = vpack.c.bf16 %v684, %v682
    %690 = vset.pattern.permute.xlu0 0
    %691 = vperm.xlu0 %690, %v85
    %v692 = vpop.permute.xlu0 %691
    %695 = vset.pattern.permute.xlu0 0
    %696 = vperm.xlu0 %695, %v86
    %v697 = vpop.permute.xlu0 %696
    %700 = vset.pattern.permute.xlu0 0
    %701 = vperm.xlu0 %700, %v87
    %v702 = vpop.permute.xlu0 %701
    %705 = vset.pattern.permute.xlu0 0
    %706 = vperm.xlu0 %705, %v88
    %v707 = vpop.permute.xlu0 %706
    %v713 = vunpack.c.l.b16 %v57
    %v714 = vunpack.c.l.b16 %v58
    %v715 = vunpack.c.l.b16 %v59
    %v716 = vunpack.c.l.b16 %v60
    %v717 = vpack.c.b16 %v714, %v713
    %v718 = vpack.c.b16 %v716, %v715
    %v720 = vsel %vm288, %v717, 0
    %v723 = vsel %vm288, %v718, 0
    %725 = vmatpush.bf16.msra.mxu0 0
    %726 = vmatpush.bf16.msra.mxu0 0
    %727 = vmatpush.bf16.msra.mxu0 0
    %728 = vmatpush.bf16.msra.mxu0 0
    %729 = vmatpush.bf16.msra.mxu0 0
    %730 = vmatpush.bf16.msra.mxu0 0
    %731 = vmatpush.bf16.msra.mxu0 %v687
    %732 = vmatpush.bf16.msra.mxu0 %v685
    %733 = vmatmul.bf16.gmra.mxu0 %v720
    %v734 = vpop.f32.mrf.mxu0
    %v735 = vadd.f32 %v692, %v734
    %v736 = vpop.f32.mrf.mxu0
    %v737 = vadd.f32 %v697, %v736
    %738 = vmatmul.bf16.gmra.mxu0 %v723
    %v739 = vpop.f32.mrf.mxu0
    %v740 = vadd.f32 %v702, %v739
    %v741 = vpop.f32.mrf.mxu0
    %v742 = vadd.f32 %v707, %v741
    %743 = vdwg.mxu0
    %744 = vmatpush.bf16.msra.mxu0 0
    %745 = vmatpush.bf16.msra.mxu0 0
    %746 = vmatpush.bf16.msra.mxu0 0
    %747 = vmatpush.bf16.msra.mxu0 0
    %748 = vmatpush.bf16.msra.mxu0 0
    %749 = vmatpush.bf16.msra.mxu0 0
    %750 = vmatpush.bf16.msra.mxu0 %v688
    %751 = vmatpush.bf16.msra.mxu0 %v686
    %752 = vmatmul.bf16.gmra.mxu0 %v720
    %v753 = vpop.f32.mrf.mxu0
    %v754 = vadd.f32 %v692, %v753
    %v755 = vpop.f32.mrf.mxu0
    %v756 = vadd.f32 %v697, %v755
    %757 = vmatmul.bf16.gmra.mxu0 %v723
    %v758 = vpop.f32.mrf.mxu0
    %v759 = vadd.f32 %v702, %v758
    %v760 = vpop.f32.mrf.mxu0
    %v761 = vadd.f32 %v707, %v760
    %762 = vdwg.mxu0
    %v763 = vmax.f32 %v735, 0.0
    %v764 = vmax.f32 %v754, 0.0
    %v765 = vmax.f32 %v737, 0.0
    %v766 = vmax.f32 %v756, 0.0
    %v767 = vmax.f32 %v740, 0.0
    %v768 = vmax.f32 %v759, 0.0
    %v769 = vmax.f32 %v742, 0.0
    %v770 = vmax.f32 %v761, 0.0
    %v771 = vpack.c.bf16 %v765, %v763
    %v772 = vpack.c.bf16 %v766, %v764
    %v773 = vpack.c.bf16 %v769, %v767
    %v774 = vpack.c.bf16 %v770, %v768
    %776 = vset.pattern.permute.xlu0 0
    %777 = vperm.xlu0 %776, %v89
    %v778 = vpop.permute.xlu0 %777
    %781 = vset.pattern.permute.xlu0 0
    %782 = vperm.xlu0 %781, %v90
    %v783 = vpop.permute.xlu0 %782
    %786 = vset.pattern.permute.xlu0 0
    %787 = vperm.xlu0 %786, %v91
    %v788 = vpop.permute.xlu0 %787
    %791 = vset.pattern.permute.xlu0 0
    %792 = vperm.xlu0 %791, %v92
    %v793 = vpop.permute.xlu0 %792
    %v799 = vunpack.c.l.b16 %v61
    %v800 = vunpack.c.l.b16 %v62
    %v801 = vunpack.c.l.b16 %v63
    %v802 = vunpack.c.l.b16 %v64
    %v803 = vpack.c.b16 %v800, %v799
    %v804 = vpack.c.b16 %v802, %v801
    %v806 = vsel %vm288, %v803, 0
    %v809 = vsel %vm288, %v804, 0
    %811 = vmatpush.bf16.msra.mxu0 0
    %812 = vmatpush.bf16.msra.mxu0 0
    %813 = vmatpush.bf16.msra.mxu0 0
    %814 = vmatpush.bf16.msra.mxu0 0
    %815 = vmatpush.bf16.msra.mxu0 0
    %816 = vmatpush.bf16.msra.mxu0 0
    %817 = vmatpush.bf16.msra.mxu0 %v773
    %818 = vmatpush.bf16.msra.mxu0 %v771
    %819 = vmatmul.bf16.gmra.mxu0 %v806
    %v820 = vpop.f32.mrf.mxu0
    %v821 = vadd.f32 %v778, %v820
    %v822 = vpop.f32.mrf.mxu0
    %v823 = vadd.f32 %v783, %v822
    %824 = vmatmul.bf16.gmra.mxu0 %v809
    %v825 = vpop.f32.mrf.mxu0
    %v826 = vadd.f32 %v788, %v825
    %v827 = vpop.f32.mrf.mxu0
    %v828 = vadd.f32 %v793, %v827
    %829 = vdwg.mxu0
    %830 = vmatpush.bf16.msra.mxu0 0
    %831 = vmatpush.bf16.msra.mxu0 0
    %832 = vmatpush.bf16.msra.mxu0 0
    %833 = vmatpush.bf16.msra.mxu0 0
    %834 = vmatpush.bf16.msra.mxu0 0
    %835 = vmatpush.bf16.msra.mxu0 0
    %836 = vmatpush.bf16.msra.mxu0 %v774
    %837 = vmatpush.bf16.msra.mxu0 %v772
    %838 = vmatmul.bf16.gmra.mxu0 %v806
    %v839 = vpop.f32.mrf.mxu0
    %v840 = vadd.f32 %v778, %v839
    %v841 = vpop.f32.mrf.mxu0
    %v842 = vadd.f32 %v783, %v841
    %843 = vmatmul.bf16.gmra.mxu0 %v809
    %v844 = vpop.f32.mrf.mxu0
    %v845 = vadd.f32 %v788, %v844
    %v846 = vpop.f32.mrf.mxu0
    %v847 = vadd.f32 %v793, %v846
    %848 = vdwg.mxu0
    %v849 = vmax.f32 %v821, 0.0
    %v850 = vmax.f32 %v840, 0.0
    %v851 = vmax.f32 %v823, 0.0
    %v852 = vmax.f32 %v842, 0.0
    %v853 = vmax.f32 %v826, 0.0
    %v854 = vmax.f32 %v845, 0.0
    %v855 = vmax.f32 %v828, 0.0
    %v856 = vmax.f32 %v847, 0.0
    %v857 = vpack.c.bf16 %v851, %v849
    %v858 = vpack.c.bf16 %v852, %v850
    %v859 = vpack.c.bf16 %v855, %v853
    %v860 = vpack.c.bf16 %v856, %v854
    %862 = vset.pattern.permute.xlu0 0
    %863 = vperm.xlu0 %862, %v94
    %v864 = vpop.permute.xlu0 %863
    %v866 = vperm.slane %v864, 0
    %v868 = vsel %vm288, %v93, 0
    %870 = vmatpush.bf16.msra.mxu0 0
    %871 = vmatpush.bf16.msra.mxu0 0
    %872 = vmatpush.bf16.msra.mxu0 0
    %873 = vmatpush.bf16.msra.mxu0 0
    %874 = vmatpush.bf16.msra.mxu0 0
    %875 = vmatpush.bf16.msra.mxu0 0
    %876 = vmatpush.bf16.msra.mxu0 %v859
    %877 = vmatpush.bf16.msra.mxu0 %v857
    %878 = vmatmul.bf16.gmra.mxu0 %v868
    %v879 = vpop.f32.mrf.mxu0
    %v880 = vadd.f32 %v866, %v879
    %v881 = vpop.f32.mrf.mxu0
    %882 = vdwg.mxu0
    %883 = vmatpush.bf16.msra.mxu0 0
    %884 = vmatpush.bf16.msra.mxu0 0
    %885 = vmatpush.bf16.msra.mxu0 0
    %886 = vmatpush.bf16.msra.mxu0 0
    %887 = vmatpush.bf16.msra.mxu0 0
    %888 = vmatpush.bf16.msra.mxu0 0
    %889 = vmatpush.bf16.msra.mxu0 %v860
    %890 = vmatpush.bf16.msra.mxu0 %v858
    %891 = vmatmul.bf16.gmra.mxu0 %v868
    %v892 = vpop.f32.mrf.mxu0
    %v893 = vadd.f32 %v866, %v892
    %v894 = vpop.f32.mrf.mxu0
    %895 = vdwg.mxu0
    %v896 = vxor.u32 %v880, 2147483648
    %v897 = vxor.u32 %v893, 2147483648
    %v898 = vmul.f32 %v896, 1.442695
    %v899 = vpow.pop %v898
    %v900 = vmul.f32 %v897, 1.442695
    %v901 = vpow.pop %v900
    %v902 = vadd.f32 %v899, 1.0
    %v903 = vadd.f32 %v901, 1.0
    %v904 = vrcp.pop %v902
    %v905 = vmul.f32 %v902, %v904
    %v906 = vsub.f32 1.0, %v905
    %v907 = vmul.f32 %v904, %v906
    %v908 = vadd.f32 %v904, %v907
    %vm909 = vweird.f32 %v902
    %vm910 = vweird.f32 %v904
    %vm911 = vmor %vm909, %vm910
    %v912 = vsel %vm911, %v904, %v908
    %v913 = vand.u32 2147483647, %v902
    %vm914 = vcmp.eq.f32.partialorder %v913, 8.507059e+37
    %v915 = vand.u32 %v902, 2147483648
    %v916 = vor.u32 1.1754944e-38, %v915
    %v917 = vsel %vm914, %v916, %v912
    %v918 = vmul.f32 1.0, %v917
    %v919 = vrcp.pop %v903
    %v920 = vmul.f32 %v903, %v919
    %v921 = vsub.f32 1.0, %v920
    %v922 = vmul.f32 %v919, %v921
    %v923 = vadd.f32 %v919, %v922
    %vm924 = vweird.f32 %v903
    %vm925 = vweird.f32 %v919
    %vm926 = vmor %vm924, %vm925
    %v927 = vsel %vm926, %v919, %v923
    %v928 = vand.u32 2147483647, %v903
    %vm929 = vcmp.eq.f32.partialorder %v928, 8.507059e+37
    %v930 = vand.u32 %v903, 2147483648
    %v931 = vor.u32 1.1754944e-38, %v930
    %v932 = vsel %vm929, %v931, %v927
    %v933 = vmul.f32 1.0, %v932
    %v936 = vrot.slane %v933, 7
    %vm937 = vcmask 1040384
    %v938 = vsel %vm937, %v918, %v936
    %s940 = scalar_lea.vmem %s7, %s102
    %v941 = vlaneseq
    %vm942 = vcmp.ge.s32.totalorder %v941, 0
    %vm943 = vcmp.lt.s32.totalorder %v941, 256
    %vm944 = vmand %vm942, %vm943
    %945 = vst.msk [vmem:[%s940] sm:$0x3] %vm944, %v938
  $region34: #{mlp_forward.1} parent=0 // loop_footer
    %s100 = sadd.s32 1, %s96
  $region35: #{mlp_forward.1} parent=0 // loop_footer_branch
    %95 = sbr.rel target = $region31
  $region36: #{mlp_forward.1} parent=0 // loop_exit
    _
  // Predicated region
  $region37: #{mlp_forward.1} parent=0 // pred_check
    _
  $region38: #{mlp_forward.1} parent=0 // pred_check_branch
    %947 = sbr.rel (0) target = $region40
  $region39: #{mlp_forward.1} parent=0 // pred_region
    _
  $region40: #{mlp_forward.1} parent=0 // pred_fallthru
    _
  // Predicated region
  $region41: #{mlp_forward.1} parent=0 // pred_check
    _
  $region42: #{mlp_forward.1} parent=0 // pred_check_branch
    %949 = sbr.rel (0) target = $region44
  $region43: #{mlp_forward.1} parent=0 // pred_region
    _
  $region44: #{mlp_forward.1} parent=0 // pred_fallthru
    _

</llo_original>
